<compile_context>
chip_gen: v5e
topology: v5e:2x2
jax: 0.10.0
libtpu: 0.0.40
codegen_flags: <defaults>
</compile_context>

<pallas_src>
import functools

import jax
import jax.numpy as jnp
from jax.experimental import pallas as pl
from jax.experimental.pallas import tpu as pltpu

_LANE = 128                      # vreg lane width: channel dims padded to multiples of this
_SUBLANE = 8                     # row tiles kept multiples of 8 (f32 sublane count)
_MAX_TILE_ROWS = 2048            # 512-2048 rows/tile: mem-bound sweet spot
_TILE_VMEM_BUDGET = 40 << 20     # double-buffered tile footprint cap (v7x has 64 MiB VMEM)


def _round_up(x, m):
    return (x + m - 1) // m * m


# ------------------------------ Pallas kernels ------------------------------ #

def _proj_kernel(x_ref, w_ref, b_ref, o_ref):
    """Level 0: out = x @ w + b  (no lateral, no zero array streamed from HBM)."""
    acc = jnp.dot(x_ref[...], w_ref[...], preferred_element_type=jnp.float32)
    o_ref[...] = (acc + b_ref[...].astype(jnp.float32)).astype(o_ref.dtype)


def _lateral_plain_kernel(x_ref, w_ref, b_ref, up_ref, o_ref):
    """out = x @ w + b + up, with `up` already at full resolution (fallback path)."""
    acc = jnp.dot(x_ref[...], w_ref[...], preferred_element_type=jnp.float32)
    acc = acc + b_ref[...].astype(jnp.float32) + up_ref[...].astype(jnp.float32)
    o_ref[...] = acc.astype(o_ref.dtype)


def _lateral_fused_kernel(x_ref, w_ref, b_ref, up_ref, o_ref, *, sh, sw):
    """out = x @ w + b + nearest_up(prev): coarse prev tile expanded in VMEM.

    x_ref:  (tm, cin_p) bf16      up_ref: (th // sh, Wp, cout_p) bf16
    o_ref:  (tm, cout_p) bf16     tm == th * W,  W == Wp * sw
    """
    acc = jnp.dot(x_ref[...], w_ref[...], preferred_element_type=jnp.float32)
    acc = acc + b_ref[...].astype(jnp.float32)
    up = up_ref[...].astype(jnp.float32)          # (th//sh, Wp, cout_p)
    if sw > 1:
        up = jnp.repeat(up, sw, axis=1)           # (th//sh, W, cout_p)  W-expand
    if sh > 1:
        up = jnp.repeat(up, sh, axis=0)           # (th,     W, cout_p)  H-expand
    o_ref[...] = (acc + up.reshape(acc.shape)).astype(o_ref.dtype)


# ------------------------------ tiling helpers ------------------------------ #

def _tile_vmem_bytes(rows, up_rows, cin_p, cout_p):
    # double-buffered bf16 streamed tiles (x, out, lateral) + resident weight/bias
    return (2 * 2 * (rows * cin_p + rows * cout_p + up_rows * cout_p)
            + 2 * cin_p * cout_p + 4 * cout_p)


def _pick_tile_h(N, H, W, cin_p, cout_p, sh, sw):
    """Largest th with th | H, sh | th, 8-aligned row tile, within the VMEM budget."""
    cands = [t for t in range(sh, H + 1, sh)
             if H % t == 0 and ((t * W) % _SUBLANE == 0 or (N == 1 and t == H))]
    if not cands:
        return None
    best = cands[0]
    for t in cands:                      # ascending -> keep the largest that fits
        rows = t * W
        if (rows <= _MAX_TILE_ROWS and
                _tile_vmem_bytes(rows, rows // (sh * sw), cin_p, cout_p)
                <= _TILE_VMEM_BUDGET):
            best = t
    return best


# ------------------------------ pallas_call builder ------------------------- #

def _conv1x1_level(x2, w, b, N, H, W, *, up2=None, prev4=None, sh=1, sw=1):
    """One FPN level as a single fused pallas_call.

    x2:    (N*H*W, cin_p) bf16 activations (channels padded to a multiple of 128).
    w:     (cin_p, cout_p) bf16,  b: (1, cout_p) f32.
    up2:   optional (N*H*W, cout_p) lateral already at full resolution.
    prev4: optional (N, Hp, Wp, cout_p) coarse lateral, upsampled in-kernel by (sh, sw).
    """
    M, cin_p = x2.shape
    cout_p = w.shape[1]
    th = _pick_tile_h(N, H, W, cin_p, cout_p, sh, sw)

    if th is None:
        # Degenerate shapes: one whole-array block (block == full dims is always legal).
        if prev4 is not None:
            raise ValueError("fused lateral path needs a row-aligned H tile")
        grid = (1,)
        tm = M
        row_spec = lambda c: pl.BlockSpec((M, c), lambda i: (0, 0))
        const_spec = lambda shape: pl.BlockSpec(shape, lambda i: (0,) * len(shape))
    else:
        n_hb = H // th
        tm = th * W
        grid = (N, n_hb)

        def _row_map(n, h):
            return (n * n_hb + h, 0)

        row_spec = lambda c: pl.BlockSpec((tm, c), _row_map)
        const_spec = lambda shape: pl.BlockSpec(shape, lambda n, h: (0,) * len(shape))

    in_specs = [row_spec(cin_p), const_spec((cin_p, cout_p)), const_spec((1, cout_p))]
    inputs = [x2, w, b]
    up_rows = 0

    if prev4 is not None:
        Wp = prev4.shape[2]
        thp = th // sh
        in_specs.append(pl.BlockSpec((None, thp, Wp, cout_p),
                                     lambda n, h: (n, h, 0, 0)))
        inputs.append(prev4)
        kernel = functools.partial(_lateral_fused_kernel, sh=sh, sw=sw)
        up_rows = thp * Wp
    elif up2 is not None:
        in_specs.append(row_spec(cout_p))
        inputs.append(up2)
        kernel = _lateral_plain_kernel
        up_rows = tm
    else:
        kernel = _proj_kernel

    vmem_need = _tile_vmem_bytes(tm, up_rows, cin_p, cout_p)
    n_steps = max(1, M // tm)
    cost = pl.CostEstimate(
        flops=2 * M * cin_p * cout_p,
        transcendentals=0,
        bytes_accessed=(2 * M * (cin_p + cout_p) + 2 * up_rows * n_steps * cout_p
                        + 2 * cin_p * cout_p + 4 * cout_p))

    return pl.pallas_call(
        kernel,
        out_shape=jax.ShapeDtypeStruct((M, cout_p), jnp.bfloat16),
        grid=grid,
        in_specs=in_specs,
        out_specs=row_spec(cout_p),
        compiler_params=pltpu.CompilerParams(
            dimension_semantics=("parallel",) * len(grid),
            vmem_limit_bytes=int(min(48 << 20, max(32 << 20, 2 * vmem_need)))),
        cost_estimate=cost,
    )(*inputs)


# ------------------------------- JAX glue ----------------------------------- #

def _upsample_nearest_nhwc(prev, H, W):
    """Matches F.interpolate(mode='nearest'): src = dst * src_size // dst_size."""
    N, Hp, Wp, C = prev.shape
    if H % Hp == 0 and W % Wp == 0:
        sh, sw = H // Hp, W // Wp
        out = jnp.broadcast_to(prev[:, :, None, :, None, :], (N, Hp, sh, Wp, sw, C))
        return out.reshape(N, H, W, C)
    ih = (jnp.arange(H) * Hp // H).astype(jnp.int32)
    iw = (jnp.arange(W) * Wp // W).astype(jnp.int32)
    return prev[:, ih][:, :, iw]


class FPNDecoderPallas:
    """JAX/Pallas FPNDecoder: out_i = Conv1x1(x_i) (+ nearest_up(out_{i-1}) for i > 0)."""

    def __init__(self, channels_in, channels_out=256, key=None):
        if key is None:
            key = jax.random.PRNGKey(0)
        self.channels_in = list(channels_in)
        self.channels_out = channels_out
        self.cout_p = _round_up(channels_out, _LANE)
        self.params = []
        for cin in channels_in:
            key, kw, kb = jax.random.split(key, 3)
            bound = 1.0 / (cin ** 0.5)            # PyTorch Conv2d default init (1x1 kernel)
            cin_p = _round_up(cin, _LANE)
            w = jax.random.uniform(kw, (cin, channels_out), jnp.float32, -bound, bound)
            b = jax.random.uniform(kb, (1, channels_out), jnp.float32, -bound, bound)
            w_p = jnp.zeros((cin_p, self.cout_p), jnp.float32)
            w_p = w_p.at[:cin, :channels_out].set(w)
            b_p = jnp.zeros((1, self.cout_p), jnp.float32)
            b_p = b_p.at[:, :channels_out].set(b)
            # bf16 weights halve the resident-weight DMA; bias stays f32 (tiny).
            self.params.append((w_p.astype(jnp.bfloat16), b_p))

    def __call__(self, xs_nhwc):
        """xs_nhwc: list of NHWC feature maps, deepest (smallest) level first."""
        outs_p = []                       # channel-padded bf16 outputs (lateral chain)
        for i, x in enumerate(xs_nhwc):
            w, b = self.params[i]
            prev = outs_p[i - 1] if i > 0 else None
            outs_p.append(self._level(x, w, b, prev))
        return [o[..., : self.channels_out] for o in outs_p]

    def _level(self, x_nhwc, w, b, prev):
        N, H, W, cin = x_nhwc.shape
        cin_p, cout_p = w.shape
        M = N * H * W

        x = x_nhwc.astype(jnp.bfloat16)
        if cin_p != cin:
            x = jnp.pad(x, ((0, 0), (0, 0), (0, 0), (0, cin_p - cin)))
        x2 = x.reshape(M, cin_p)

        if prev is None:
            out2 = _conv1x1_level(x2, w, b, N, H, W)
        else:
            Hp, Wp = prev.shape[1], prev.shape[2]
            integer = (H % Hp == 0) and (W % Wp == 0)
            sh, sw = (H // Hp, W // Wp) if integer else (1, 1)
            out2 = None
            fuse = (integer and (sh > 1 or sw > 1) and W % _SUBLANE == 0
                    and _pick_tile_h(N, H, W, cin_p, cout_p, sh, sw) is not None)
            if fuse:
                try:
                    out2 = jax.block_until_ready(
                        _conv1x1_level(x2, w, b, N, H, W, prev4=prev, sh=sh, sw=sw))
                except Exception:  # noqa: BLE001  fall back if Mosaic rejects the fused form
                    out2 = None
            if out2 is None:
                # TODO(synk): non-integer / non-fusable scales fall back to an
                # XLA-materialized upsample instead of an in-kernel gather.
                up = prev if (Hp, Wp) == (H, W) else _upsample_nearest_nhwc(prev, H, W)
                out2 = _conv1x1_level(x2, w, b, N, H, W, up2=up.reshape(M, cout_p))
        return out2.reshape(N, H, W, cout_p)


def _reference_forward(decoder, xs_nhwc):
    """Pure-JAX reference mirroring the kernel's bf16 storage chain."""
    outs = []
    for i, x in enumerate(xs_nhwc):
        w_p, b_p = decoder.params[i]
        cin = x.shape[-1]
        w = w_p[:cin, : decoder.channels_out].astype(jnp.float32)
        b = b_p[:, : decoder.channels_out].astype(jnp.float32)
        xb = x.astype(jnp.bfloat16).astype(jnp.float32)
        proj = jnp.einsum("nhwc,co->nhwo", xb, w) + b.reshape(1, 1, 1, -1)
        if i > 0:
            up = _upsample_nearest_nhwc(outs[i - 1].astype(jnp.float32),
                                        x.shape[1], x.shape[2])
            proj = proj + up
        outs.append(proj.astype(jnp.bfloat16))
    return outs


# --------------------------------- main -------------------------------------- #

if __name__ == "__main__":
    key = jax.random.PRNGKey(0)
    k0, k1, k2, kp = jax.random.split(key, 4)

    # NCHW shapes as the PyTorch module would see them (deepest level first).
    channels_in = [16, 8, 4]
    channels_out = 256                     # module default; multiple of 128 (lane-dense)
    x_nchw = [
        jax.random.normal(k0, (2, 16, 4, 4), jnp.float32),
        jax.random.normal(k1, (2, 8, 8, 8), jnp.float32),
        jax.random.normal(k2, (2, 4, 16, 16), jnp.float32),
    ]
    xs_nhwc = [jnp.transpose(x, (0, 2, 3, 1)) for x in x_nchw]

    decoder = FPNDecoderPallas(channels_in, channels_out, key=kp)
    outs = decoder(xs_nhwc)
    outs = [jax.block_until_ready(o) for o in outs]

    refs = _reference_forward(decoder, xs_nhwc)
    for o, r in zip(outs, refs):
        assert o.shape == r.shape, (o.shape, r.shape)
        of, rf = o.astype(jnp.float32), r.astype(jnp.float32)
        assert jnp.allclose(of, rf, atol=3e-2, rtol=3e-2), float(jnp.max(jnp.abs(of - rf)))

    print("KERNEL_OK")
</pallas_src>

<mosaic_0001>
module attributes {stable_mosaic.version = 11 : i64} {
  func.func @_proj_kernel(%arg0: i32, %arg1: i32, %arg2: memref<16x128xbf16, #tpu.memory_space<vmem>>, %arg3: memref<128x256xbf16, #tpu.memory_space<vmem>>, %arg4: memref<1x256xf32, #tpu.memory_space<vmem>>, %arg5: memref<16x256xbf16, #tpu.memory_space<vmem>>) attributes {dimension_semantics = [#tpu.dimension_semantics<parallel>, #tpu.dimension_semantics<parallel>], iteration_bounds = array<i64: 2, 1>, scalar_prefetch = 0 : i64, scratch_operands = 0 : i64, tpu.core_type = #tpu.core_type<tc>, window_params = [{transform_indices = @transform_0, window_bounds = array<i64: 16, 128>}, {pipeline_mode = #tpu.pipeline_mode<synchronous>, transform_indices = @transform_1, window_bounds = array<i64: 128, 256>}, {pipeline_mode = #tpu.pipeline_mode<synchronous>, transform_indices = @transform_2, window_bounds = array<i64: 1, 256>}, {transform_indices = @transform_3, window_bounds = array<i64: 16, 256>}]} {
    %c0 = arith.constant 0 : index
    %c0_0 = arith.constant 0 : index
    %0 = vector.load %arg2[%c0, %c0_0] : memref<16x128xbf16, #tpu.memory_space<vmem>>, vector<16x128xbf16>
    %c0_1 = arith.constant 0 : index
    %c0_2 = arith.constant 0 : index
    %1 = vector.load %arg3[%c0_1, %c0_2] : memref<128x256xbf16, #tpu.memory_space<vmem>>, vector<128x256xbf16>
    %cst = arith.constant dense<0.000000e+00> : vector<16x256xf32>
    %2 = tpu.matmul %0, %1, %cst {dimension_numbers = #tpu.dot_dimension_numbers<[1], [0], [0], [1], [0, 0, 1, 1], [], []>} : vector<16x128xbf16>, vector<128x256xbf16>, vector<16x256xf32> -> vector<16x256xf32>
    %c0_3 = arith.constant 0 : index
    %c0_4 = arith.constant 0 : index
    %3 = vector.load %arg4[%c0_3, %c0_4] : memref<1x256xf32, #tpu.memory_space<vmem>>, vector<1x256xf32>
    %4 = vector.broadcast %3 : vector<1x256xf32> to vector<16x256xf32>
    %5 = arith.addf %2, %4 : vector<16x256xf32>
    %6 = arith.truncf %5 : vector<16x256xf32> to vector<16x256xbf16>
    %c0_5 = arith.constant 0 : index
    %c0_6 = arith.constant 0 : index
    %7 = vector.load %arg5[%c0_5, %c0_6] : memref<16x256xbf16, #tpu.memory_space<vmem>>, vector<16x256xbf16>
    tpu.vector_store %arg5[%c0_5, %c0_6], %6 {strides = array<i32>} : memref<16x256xbf16, #tpu.memory_space<vmem>>, vector<16x256xbf16>,
    return
  }
  func.func @transform_0(%arg0: i32, %arg1: i32) -> (i32, i32) {
    %c1_i32 = arith.constant 1 : i32
    %0 = arith.muli %arg0, %c1_i32 : i32
    %1 = arith.addi %0, %arg1 : i32
    %c0_i32 = arith.constant 0 : i32
    %c0_i32_0 = arith.constant 0 : i32
    return %1, %c0_i32 : i32, i32
  }
  func.func @transform_1(%arg0: i32, %arg1: i32) -> (i32, i32) {
    %c0_i32 = arith.constant 0 : i32
    %c0_i32_0 = arith.constant 0 : i32
    %c0_i32_1 = arith.constant 0 : i32
    return %c0_i32, %c0_i32_0 : i32, i32
  }
  func.func @transform_2(%arg0: i32, %arg1: i32) -> (i32, i32) {
    %c0_i32 = arith.constant 0 : i32
    %c0_i32_0 = arith.constant 0 : i32
    %c0_i32_1 = arith.constant 0 : i32
    return %c0_i32, %c0_i32_0 : i32, i32
  }
  func.func @transform_3(%arg0: i32, %arg1: i32) -> (i32, i32) {
    %c1_i32 = arith.constant 1 : i32
    %0 = arith.muli %arg0, %c1_i32 : i32
    %1 = arith.addi %0, %arg1 : i32
    %c0_i32 = arith.constant 0 : i32
    %c0_i32_0 = arith.constant 0 : i32
    return %1, %c0_i32 : i32, i32
  }
}

</mosaic_0001>

<llo_original>
// kernel: tpu_custom_call.1
$region0: #{tpu_custom_call.1}
  #allocation0 [shape = 'u32[]', space=smem, size = 0x4, offset = 0x4, fixed_abs, tag = 'smem constant byte address 0x4 - core index']
  #allocation1 [shape = 'u32[72,128]{1,0:T(1,128)}', space=vmem, size = 0x9000, scoped, tag = 'internal scratch']
  %s0 = inlined_call_operand.hbm [shape: bf16[32,128], index: 0, kind: input, shape index: {}]
  %s1 = inlined_call_operand.hbm [shape: bf16[128,256], index: 1, kind: input, shape index: {}]
  %s2 = inlined_call_operand.hbm [shape: f32[1,256], index: 2, kind: input, shape index: {}]
  %s3 = inlined_call_operand.hbm [shape: bf16[32,256], index: 3, kind: output, shape index: {}]
  %s4 = sld [smem:[#allocation0]]
  $region57: #{tpu_custom_call.1} parent=0
    _
  %s6 = ssub.s32 1, %s4
  %s7 = scalar_select 0, %s6, %s4
  $region1: #{tpu_custom_call.1} parent=0
    #allocation2 [shape = 'u8[8192]{0}', space=vmem, size = 0x2000, scoped, tag = 'input window, operand 0']
    #allocation3 [shape = 's32[2]{0}', space=sflag, size = 0x8, scoped, tag = 'scoped memory for tpu_custom_call.1']
    #allocation4 [shape = 's32[2]{0}', space=sflag, size = 0x8, scoped, tag = 'scoped memory for tpu_custom_call.1']
    #allocation5 [shape = 'u8[65536]{0}', space=vmem, size = 0x10000, scoped, tag = 'input window, operand 1, single buffered']
    #allocation6 [shape = 's32[1]{0}', space=sflag, size = 0x4, scoped, tag = 'scoped memory for tpu_custom_call.1']
    #allocation7 [shape = 'u8[1024]{0}', space=vmem, size = 0x400, scoped, tag = 'input window, operand 2, single buffered']
    #allocation8 [shape = 'u8[16384]{0}', space=vmem, size = 0x4000, scoped, tag = 'output window, operand 0']
    %8 = vsyncpa [#allocation3], 0
    %s9 = scalar_lea.sflag [#allocation3], 1
    %10 = vsyncpa %s9, 0
    %11 = vsyncpa [#allocation6], 0
    %12 = vsyncpa [#allocation4], 0
    %s13 = scalar_lea.sflag [#allocation4], 1
    %14 = vsyncpa %s13, 0
    loop: start=0, step=1, limit=4
    $region2: #{tpu_custom_call.1} parent=1 // loop_pre_header
      _
    $region3: #{tpu_custom_call.1} parent=1 // loop_header
      %s16 = sphi 0, %s20
      %p17 = scmp.ge.s32.totalorder %s16, 4
      %s23 = sphi 0, %s35
      %s24 = sphi 0, %s31
      %s25 = sphi 0, %s23
      %s26 = sphi 0, %s24
      %s27 = sphi 0, %s25
      %s28 = sphi 0, %s26
      %s40 = sphi 0, %s42
      %s43 = sphi 0, %s40
      %s44 = sphi 0, %s43
      %s60 = sphi 0, %s44
      %s64 = sphi 0, %s64
      %s66 = sphi 0, %s64
      %s67 = sphi 0, %s66
      %s81 = sphi 0, %s67
      %s85 = sphi 0, %s85
      %s87 = sphi 0, %s85
      %s88 = sphi 0, %s87
      %s102 = sphi 0, %s88
      %s110 = sphi 0, %s112
      %s113 = sphi 0, %s110
      %s114 = sphi 0, %s113
      %s130 = sphi 0, %s114
    $region4: #{tpu_custom_call.1} parent=1 // loop_header_branch
      %19 = sbr.rel (%p17) target = $region8
    $region5: #{tpu_custom_call.1} parent=1 // loop_body
      %s21 = ssub.s32 %s16, 1
      %s22 = ssub.s32 %s16, 2
      %s29 = sadd.s32 1, %s24
      %p30 = scmp.ge.s32.totalorder %s29, 1
      %s31 = scalar_select %p30, 0, %s29
      %s32 = sadd.s32 1, %s23
      %s33 = scalar_select %p30, %s32, %s23
      %p34 = scmp.ge.s32.totalorder %s33, 2
      %s35 = scalar_select %p34, 0, %s33
      %s36 = sadd.s32 %s23, %s24
      %s37 = sadd.s32 %s35, %s31
      %s38 = ssub.s32 %s36, %s37
      %p39 = scmp.eq.s32.totalorder %s38, 0
      %s41 = sadd.s32 %s40, 1
      %s42 = scalar_select %p39, %s40, %s41
      %p45 = pneg %p39
      %p46 = scmp.eq.s32.totalorder %s16, 1
      %p47 = por %p45, %p46
      %p48 = scmp.ne.s32.totalorder %s40, %s43
      %p49 = scmp.eq.s32.totalorder %s16, 0
      %p50 = por %p48, %p49
      %p51 = scmp.ne.s32.totalorder %s40, %s43
      %p52 = scmp.eq.s32.totalorder %s21, 1
      %p53 = por %p51, %p52
      %p54 = scmp.ne.s32.totalorder %s43, %s44
      %p55 = scmp.eq.s32.totalorder %s21, 0
      %p56 = por %p54, %p55
      %p57 = scmp.ne.s32.totalorder %s43, %s44
      %p58 = scmp.eq.s32.totalorder %s22, 1
      %p59 = por %p57, %p58
      %p61 = scmp.ne.s32.totalorder %s44, %s60
      %p62 = scmp.eq.s32.totalorder %s22, 0
      %p63 = por %p61, %p62
      %s65 = sadd.s32 %s64, 1
      %p68 = scmp.eq.s32.totalorder %s16, 1
      %p69 = scmp.ne.s32.totalorder %s64, %s66
      %p70 = scmp.eq.s32.totalorder %s16, 0
      %p71 = por %p69, %p70
      %p72 = scmp.ne.s32.totalorder %s64, %s66
      %p73 = scmp.eq.s32.totalorder %s21, 1
      %p74 = por %p72, %p73
      %p75 = scmp.ne.s32.totalorder %s66, %s67
      %p76 = scmp.eq.s32.totalorder %s21, 0
      %p77 = por %p75, %p76
      %p78 = scmp.ne.s32.totalorder %s66, %s67
      %p79 = scmp.eq.s32.totalorder %s22, 1
      %p80 = por %p78, %p79
      %p82 = scmp.ne.s32.totalorder %s67, %s81
      %p83 = scmp.eq.s32.totalorder %s22, 0
      %p84 = por %p82, %p83
      %s86 = sadd.s32 %s85, 1
      %p89 = scmp.eq.s32.totalorder %s16, 1
      %p90 = scmp.ne.s32.totalorder %s85, %s87
      %p91 = scmp.eq.s32.totalorder %s16, 0
      %p92 = por %p90, %p91
      %p93 = scmp.ne.s32.totalorder %s85, %s87
      %p94 = scmp.eq.s32.totalorder %s21, 1
      %p95 = por %p93, %p94
      %p96 = scmp.ne.s32.totalorder %s87, %s88
      %p97 = scmp.eq.s32.totalorder %s21, 0
      %p98 = por %p96, %p97
      %p99 = scmp.ne.s32.totalorder %s87, %s88
      %p100 = scmp.eq.s32.totalorder %s22, 1
      %p101 = por %p99, %p100
      %p103 = scmp.ne.s32.totalorder %s88, %s102
      %p104 = scmp.eq.s32.totalorder %s22, 0
      %p105 = por %p103, %p104
      %s106 = sadd.s32 %s23, %s24
      %s107 = sadd.s32 %s35, %s31
      %s108 = ssub.s32 %s106, %s107
      %p109 = scmp.eq.s32.totalorder %s108, 0
      %s111 = sadd.s32 %s110, 1
      %s112 = scalar_select %p109, %s110, %s111
      %p115 = pneg %p109
      %p116 = scmp.eq.s32.totalorder %s16, 1
      %p117 = por %p115, %p116
      %p118 = scmp.ne.s32.totalorder %s110, %s113
      %p119 = scmp.eq.s32.totalorder %s16, 0
      %p120 = por %p118, %p119
      %p121 = scmp.ne.s32.totalorder %s110, %s113
      %p122 = scmp.eq.s32.totalorder %s21, 1
      %p123 = por %p121, %p122
      %p124 = scmp.ne.s32.totalorder %s113, %s114
      %p125 = scmp.eq.s32.totalorder %s21, 0
      %p126 = por %p124, %p125
      %p127 = scmp.ne.s32.totalorder %s113, %s114
      %p128 = scmp.eq.s32.totalorder %s22, 1
      %p129 = por %p127, %p128
      %p131 = scmp.ne.s32.totalorder %s114, %s130
      %p132 = scmp.eq.s32.totalorder %s22, 0
      %p133 = por %p131, %p132
      %p134 = scmp.le.s32.totalorder 1, %s16
      %p135 = scmp.lt.s32.totalorder %s16, 3
      %p136 = pnand %p134, %p135
      %p137 = pneg %p136
      // Predicated region
      $region9: #{tpu_custom_call.1} parent=5 // pred_check
        _
      $region10: #{tpu_custom_call.1} parent=5 // pred_check_branch
        %139 = sbr.rel (%p136) target = $region12
      $region11: #{tpu_custom_call.1} parent=5 // pred_region
        %s140 = ssub.s32 %s16, 1
        // Predicated region
        $region13: #{tpu_custom_call.1} parent=11 // pred_check
          %p141 = pneg %p77
        $region14: #{tpu_custom_call.1} parent=11 // pred_check_branch
          %143 = sbr.rel (%p141) target = $region16
        $region15: #{tpu_custom_call.1} parent=11 // pred_region
          %145 = vsyncadd [#allocation6], 0
          %s146 = sshll.u32 %s1, 4
          %s147 = int_to_ptr.hbm [resolvable:$true] %s146
          %s148 = sshll.u32 [#allocation5], 4
          %s149 = int_to_ptr.vmem [resolvable:$true] %s148
          %154 = dma.hbm_to_vmem [thread:$0]  %s147, 2048, %s149, [#allocation6], 128, 128, 8
        $region16: #{tpu_custom_call.1} parent=11 // pred_fallthru
          _
        // Predicated region
        $region17: #{tpu_custom_call.1} parent=11 // pred_check
          %p155 = pneg %p98
        $region18: #{tpu_custom_call.1} parent=11 // pred_check_branch
          %157 = sbr.rel (%p155) target = $region20
        $region19: #{tpu_custom_call.1} parent=11 // pred_region
          %159 = vsyncadd [#allocation6], 0
          %s161 = sshll.u32 %s2, 4
          %s162 = int_to_ptr.hbm [resolvable:$true] %s161
          %s163 = sshll.u32 [#allocation7], 4
          %s164 = int_to_ptr.vmem [resolvable:$true] %s163
          %166 = dma.hbm_to_vmem [thread:$0]  %s162, 32, %s164, [#allocation6]
        $region20: #{tpu_custom_call.1} parent=11 // pred_fallthru
          _
      $region12: #{tpu_custom_call.1} parent=5 // pred_fallthru
        _
      %p167 = scmp.lt.s32.totalorder %s16, 2
      // Predicated region
      $region21: #{tpu_custom_call.1} parent=5 // pred_check
        %p168 = pneg %p167
      $region22: #{tpu_custom_call.1} parent=5 // pred_check_branch
        %170 = sbr.rel (%p168) target = $region24
      $region23: #{tpu_custom_call.1} parent=5 // pred_region
        // Predicated region
        $region25: #{tpu_custom_call.1} parent=23 // pred_check
          %p171 = pneg %p50
        $region26: #{tpu_custom_call.1} parent=23 // pred_check_branch
          %173 = sbr.rel (%p171) target = $region28
        $region27: #{tpu_custom_call.1} parent=23 // pred_region
          %s174 = sand.u32 %s40, 1
          %s175 = scalar_lea.sflag [#allocation3], %s174
          %s176 = sand.u32 %s40, 1
          %s177 = smul.addr %s176, 8
          %s178 = scalar_lea.vmem [#allocation2], %s177
          %s179 = sadd.s32 %s23, %s24
          %s180 = smul.u32 2, %s179
          %182 = vsyncadd %s175, 0
          %s183 = smul.addr %s180, 4
          %s184 = scalar_lea.hbm %s0, %s183
          %s185 = sshll.u32 %s184, 4
          %s186 = int_to_ptr.hbm [resolvable:$true] %s185
          %s187 = sshll.u32 %s178, 4
          %s188 = int_to_ptr.vmem [resolvable:$true] %s187
          %193 = dma.hbm_to_vmem [thread:$0]  %s186, 128, %s188, %s175, 64, 64, 4
        $region28: #{tpu_custom_call.1} parent=23 // pred_fallthru
          _
      $region24: #{tpu_custom_call.1} parent=5 // pred_fallthru
        _
      %p194 = scmp.le.s32.totalorder 1, %s16
      %p195 = scmp.lt.s32.totalorder %s16, 3
      %p196 = pnand %p194, %p195
      %p197 = pneg %p196
      // Predicated region
      $region29: #{tpu_custom_call.1} parent=5 // pred_check
        _
      $region30: #{tpu_custom_call.1} parent=5 // pred_check_branch
        %199 = sbr.rel (%p196) target = $region32
      $region31: #{tpu_custom_call.1} parent=5 // pred_region
        %s200 = ssub.s32 %s16, 1
        %s201 = sand.u32 %s43, 1
        %s202 = scalar_lea.sflag [#allocation3], %s201
        %s203 = sand.u32 %s43, 1
        %s204 = smul.addr %s203, 8
        %s205 = scalar_lea.vmem [#allocation2], %s204
        // Predicated region
        $region33: #{tpu_custom_call.1} parent=31 // pred_check
          %p206 = pneg %p56
        $region34: #{tpu_custom_call.1} parent=31 // pred_check_branch
          %208 = sbr.rel (%p206) target = $region36
        $region35: #{tpu_custom_call.1} parent=31 // pred_region
          %210 = dma.done %s202, 128
        $region36: #{tpu_custom_call.1} parent=31 // pred_fallthru
          _
        // Predicated region
        $region37: #{tpu_custom_call.1} parent=31 // pred_check
          %p211 = pneg %p77
        $region38: #{tpu_custom_call.1} parent=31 // pred_check_branch
          %213 = sbr.rel (%p211) target = $region40
        $region39: #{tpu_custom_call.1} parent=31 // pred_region
          %215 = dma.done [#allocation6], 2048
        $region40: #{tpu_custom_call.1} parent=31 // pred_fallthru
          _
        // Predicated region
        $region41: #{tpu_custom_call.1} parent=31 // pred_check
          %p216 = pneg %p98
        $region42: #{tpu_custom_call.1} parent=31 // pred_check_branch
          %218 = sbr.rel (%p216) target = $region44
        $region43: #{tpu_custom_call.1} parent=31 // pred_region
          %220 = dma.done [#allocation6], 32
        $region44: #{tpu_custom_call.1} parent=31 // pred_fallthru
          _
        %s221 = sand.u32 %s43, 1
        %s222 = scalar_lea.sflag [#allocation3], %s221
        %s223 = sand.u32 %s43, 1
        %s224 = smul.addr %s223, 8
        %s225 = scalar_lea.vmem [#allocation2], %s224
        %p226 = pneg %p56
        %p227 = pneg %p53
        %p228 = pneg %p77
        %p229 = pneg %p74
        %p230 = pneg %p98
        %p231 = pneg %p95
        %p232 = pneg %p126
        %p233 = pneg %p123
        %s234 = sand.u32 %s113, 1
        %s235 = scalar_lea.sflag [#allocation4], %s234
        %s236 = sand.u32 %s113, 1
        %s237 = smul.addr %s236, 16
        %s238 = scalar_lea.vmem [#allocation8], %s237
        %s239 = sadd.s32 %s25, %s26
        %s240 = smul.u32 2, %s239
        %s241 = sadd.s32 %s25, %s26
        %s242 = smul.u32 2, %s241
        %v243 = vld [vmem:[%s205] sm:$0xf]
        %v244 = vld [vmem:[%s205 + $0x4] sm:$0xf]
        %v245 = vld [vmem:[#allocation5] sm:$0xff]
        %v246 = vld [vmem:[#allocation5 + $0x8] sm:$0xff]
        %v247 = vld [vmem:[#allocation5 + $0x10] sm:$0xff]
        %v248 = vld [vmem:[#allocation5 + $0x18] sm:$0xff]
        %v249 = vld [vmem:[#allocation5 + $0x20] sm:$0xff]
        %v250 = vld [vmem:[#allocation5 + $0x28] sm:$0xff]
        %v251 = vld [vmem:[#allocation5 + $0x30] sm:$0xff]
        %v252 = vld [vmem:[#allocation5 + $0x38] sm:$0xff]
        %v253 = vld [vmem:[#allocation5 + $0x40] sm:$0xff]
        %v254 = vld [vmem:[#allocation5 + $0x48] sm:$0xff]
        %v255 = vld [vmem:[#allocation5 + $0x50] sm:$0xff]
        %v256 = vld [vmem:[#allocation5 + $0x58] sm:$0xff]
        %v257 = vld [vmem:[#allocation5 + $0x60] sm:$0xff]
        %v258 = vld [vmem:[#allocation5 + $0x68] sm:$0xff]
        %v259 = vld [vmem:[#allocation5 + $0x70] sm:$0xff]
        %v260 = vld [vmem:[#allocation5 + $0x78] sm:$0xff]
        %v261 = vld [vmem:[#allocation7] sm:$0x3]
        %v263 = vperm.slane %v261, 0
        %v264 = vperm.slane %v261, 1
        %v269 = vunpack.c.l.b16 %v243
        %v270 = vunpack.c.l.b16 %v244
        %v271 = vpack.c.b16 %v270, %v269
        %v289 = vunpack.c.l.b16 %v245
        %v290 = vunpack.c.h.b16 %v245
        %v291 = vunpack.c.l.b16 %v246
        %v292 = vunpack.c.h.b16 %v246
        %v293 = vunpack.c.l.b16 %v247
        %v294 = vunpack.c.h.b16 %v247
        %v295 = vunpack.c.l.b16 %v248
        %v296 = vunpack.c.h.b16 %v248
        %v297 = vunpack.c.l.b16 %v249
        %v298 = vunpack.c.h.b16 %v249
        %v299 = vunpack.c.l.b16 %v250
        %v300 = vunpack.c.h.b16 %v250
        %v301 = vunpack.c.l.b16 %v251
        %v302 = vunpack.c.h.b16 %v251
        %v303 = vunpack.c.l.b16 %v252
        %v304 = vunpack.c.h.b16 %v252
        %v305 = vunpack.c.l.b16 %v253
        %v306 = vunpack.c.h.b16 %v253
        %v307 = vunpack.c.l.b16 %v254
        %v308 = vunpack.c.h.b16 %v254
        %v309 = vunpack.c.l.b16 %v255
        %v310 = vunpack.c.h.b16 %v255
        %v311 = vunpack.c.l.b16 %v256
        %v312 = vunpack.c.h.b16 %v256
        %v313 = vunpack.c.l.b16 %v257
        %v314 = vunpack.c.h.b16 %v257
        %v315 = vunpack.c.l.b16 %v258
        %v316 = vunpack.c.h.b16 %v258
        %v317 = vunpack.c.l.b16 %v259
        %v318 = vunpack.c.h.b16 %v259
        %v319 = vunpack.c.l.b16 %v260
        %v320 = vunpack.c.h.b16 %v260
        %v321 = vpack.c.b16 %v291, %v289
        %v322 = vpack.c.b16 %v292, %v290
        %v323 = vpack.c.b16 %v295, %v293
        %v324 = vpack.c.b16 %v296, %v294
        %v325 = vpack.c.b16 %v299, %v297
        %v326 = vpack.c.b16 %v300, %v298
        %v327 = vpack.c.b16 %v303, %v301
        %v328 = vpack.c.b16 %v304, %v302
        %v329 = vpack.c.b16 %v307, %v305
        %v330 = vpack.c.b16 %v308, %v306
        %v331 = vpack.c.b16 %v311, %v309
        %v332 = vpack.c.b16 %v312, %v310
        %v333 = vpack.c.b16 %v315, %v313
        %v334 = vpack.c.b16 %v316, %v314
        %v335 = vpack.c.b16 %v319, %v317
        %v336 = vpack.c.b16 %v320, %v318
        %353 = vmatpush.bf16.msra.mxu0 %v335
        %354 = vmatpush.bf16.msra.mxu0 %v333
        %355 = vmatpush.bf16.msra.mxu0 %v331
        %356 = vmatpush.bf16.msra.mxu0 %v329
        %357 = vmatpush.bf16.msra.mxu0 %v327
        %358 = vmatpush.bf16.msra.mxu0 %v325
        %359 = vmatpush.bf16.msra.mxu0 %v323
        %360 = vmatpush.bf16.msra.mxu0 %v321
        %361 = vmatmul.bf16.gmra.mxu0 %v271
        %v362 = vpop.f32.mrf.mxu0
        %v363 = vadd.f32 %v263, %v362
        %v364 = vpop.f32.mrf.mxu0
        %v365 = vadd.f32 %v263, %v364
        %366 = vdwg.mxu0
        %367 = vmatpush.bf16.msra.mxu0 %v336
        %368 = vmatpush.bf16.msra.mxu0 %v334
        %369 = vmatpush.bf16.msra.mxu0 %v332
        %370 = vmatpush.bf16.msra.mxu0 %v330
        %371 = vmatpush.bf16.msra.mxu0 %v328
        %372 = vmatpush.bf16.msra.mxu0 %v326
        %373 = vmatpush.bf16.msra.mxu0 %v324
        %374 = vmatpush.bf16.msra.mxu0 %v322
        %375 = vmatmul.bf16.gmra.mxu0 %v271
        %v376 = vpop.f32.mrf.mxu0
        %v377 = vadd.f32 %v264, %v376
        %v378 = vpop.f32.mrf.mxu0
        %v379 = vadd.f32 %v264, %v378
        %380 = vdwg.mxu0
        %v381 = vpack.c.bf16 %v377, %v363
        %v382 = vpack.c.bf16 %v379, %v365
        %383 = vst [vmem:[%s238] sm:$0xff] %v381
        %384 = vst [vmem:[%s238 + $0x8] sm:$0xff] %v382
        %s385 = sand.u32 %s113, 1
        %s386 = scalar_lea.sflag [#allocation4], %s385
        %s387 = sand.u32 %s113, 1
        %s388 = smul.addr %s387, 16
        %s389 = scalar_lea.vmem [#allocation8], %s388
        // Predicated region
        $region45: #{tpu_custom_call.1} parent=31 // pred_check
          %p390 = pneg %p123
        $region46: #{tpu_custom_call.1} parent=31 // pred_check_branch
          %392 = sbr.rel (%p390) target = $region48
        $region47: #{tpu_custom_call.1} parent=31 // pred_region
          %s393 = sadd.s32 %s25, %s26
          %s394 = smul.u32 2, %s393
          %396 = vsyncadd %s386, 0
          %s397 = smul.addr %s394, 2
          %s398 = smul.addr %s397, 4
          %s399 = scalar_lea.hbm %s3, %s398
          %s400 = sshll.u32 %s389, 4
          %s401 = int_to_ptr.vmem [resolvable:$true] %s400
          %s402 = sshll.u32 %s399, 4
          %s403 = int_to_ptr.hbm [resolvable:$true] %s402
          %408 = dma.vmem_to_hbm [thread:$0]  %s401, 256, %s403, %s386, 128, 128, 8
        $region48: #{tpu_custom_call.1} parent=31 // pred_fallthru
          _
      $region32: #{tpu_custom_call.1} parent=5 // pred_fallthru
        _
      %p409 = scmp.le.s32.totalorder 2, %s16
      // Predicated region
      $region49: #{tpu_custom_call.1} parent=5 // pred_check
        %p410 = pneg %p409
      $region50: #{tpu_custom_call.1} parent=5 // pred_check_branch
        %412 = sbr.rel (%p410) target = $region52
      $region51: #{tpu_custom_call.1} parent=5 // pred_region
        %s413 = ssub.s32 %s16, 2
        // Predicated region
        $region53: #{tpu_custom_call.1} parent=51 // pred_check
          %p414 = pneg %p129
        $region54: #{tpu_custom_call.1} parent=51 // pred_check_branch
          %416 = sbr.rel (%p414) target = $region56
        $region55: #{tpu_custom_call.1} parent=51 // pred_region
          %s417 = sand.u32 %s114, 1
          %s418 = scalar_lea.sflag [#allocation4], %s417
          %s419 = sand.u32 %s114, 1
          %s420 = smul.addr %s419, 16
          %s421 = scalar_lea.vmem [#allocation8], %s420
          %423 = dma.done %s418, 256
        $region56: #{tpu_custom_call.1} parent=51 // pred_fallthru
          _
      $region52: #{tpu_custom_call.1} parent=5 // pred_fallthru
        _
    $region6: #{tpu_custom_call.1} parent=1 // loop_footer
      %s20 = sadd.s32 1, %s16
    $region7: #{tpu_custom_call.1} parent=1 // loop_footer_branch
      %15 = sbr.rel target = $region3
    $region8: #{tpu_custom_call.1} parent=1 // loop_exit
      _
    %424 = vsyncpa [#allocation3], 1
    %s425 = scalar_lea.sflag [#allocation3], 1
    %426 = vsyncpa %s425, 1
    %427 = vsyncpa [#allocation6], 1
    %428 = vsyncpa [#allocation4], 1
    %s429 = scalar_lea.sflag [#allocation4], 1
    %430 = vsyncpa %s429, 1

</llo_original>
